<compile_context>
chip_gen: v5e
topology: v5e:2x2
jax: 0.10.0
libtpu: 0.0.40
codegen_flags: <defaults>
</compile_context>

<pallas_src>
import functools

import jax
import jax.numpy as jnp
from jax.experimental import pallas as pl
from jax.experimental.pallas import tpu as pltpu

IN_FEATURES = 4
K1_PAD = 8          # fc1 contraction dim padded 4 -> 8
H1 = 128
H2 = 256
OUT_FEATURES = 10
OUT_PAD = 128       # fc3 output dim padded 10 -> 128 (lane-dense stores)


def _round_up(n, m):
    return ((n + m - 1) // m) * m


def mlp_kernel(x_ref, w1_ref, b1_ref, w2_ref, b2_ref, w3_ref, b3_ref, o_ref):
    # fc1 + relu (bf16 operands, f32 accumulate; elementwise in f32)
    x = x_ref[...].astype(jnp.bfloat16)
    h1 = jnp.dot(x, w1_ref[...], preferred_element_type=jnp.float32)
    h1 = jnp.maximum(h1 + b1_ref[...], 0.0)

    # fc2 + relu
    h2 = jnp.dot(h1.astype(jnp.bfloat16), w2_ref[...],
                 preferred_element_type=jnp.float32)
    h2 = jnp.maximum(h2 + b2_ref[...], 0.0)

    # fc3 (no activation); output block is lane-dense (TB, 128)
    out = jnp.dot(h2.astype(jnp.bfloat16), w3_ref[...],
                  preferred_element_type=jnp.float32)
    o_ref[...] = (out + b3_ref[...]).astype(o_ref.dtype)


@functools.partial(jax.jit, static_argnames=("max_batch_tile",))
def multimodal_forward(x, prepared_params, *, max_batch_tile=512):
    """x: [B, 4] f32.  prepared_params: output of prepare_params()."""
    w1, b1, w2, b2, w3, b3 = prepared_params
    B, F = x.shape
    assert F == IN_FEATURES

    # Batch tile: multiple of 8 (sublane), capped for VMEM headroom (v7x 64MiB).
    TB = min(max_batch_tile, _round_up(B, 8))
    B_pad = _round_up(B, TB)

    # Zero-pad batch to a multiple of TB and the feature dim 4 -> 8.
    x_p = jnp.zeros((B_pad, K1_PAD), x.dtype).at[:B, :F].set(x)

    grid = (B_pad // TB,)

    flops = 2 * B_pad * (K1_PAD * H1 + H1 * H2 + H2 * OUT_PAD)
    bytes_accessed = (
        x_p.size * x_p.dtype.itemsize
        + B_pad * OUT_PAD * 4
        + sum(a.size * a.dtype.itemsize for a in (w1, b1, w2, b2, w3, b3))
    )

    out = pl.pallas_call(
        mlp_kernel,
        out_shape=jax.ShapeDtypeStruct((B_pad, OUT_PAD), jnp.float32),
        grid=grid,
        in_specs=[
            pl.BlockSpec((TB, K1_PAD), lambda i: (i, 0)),     # x tile
            pl.BlockSpec((K1_PAD, H1), lambda i: (0, 0)),     # w1 (resident)
            pl.BlockSpec((1, H1), lambda i: (0, 0)),          # b1
            pl.BlockSpec((H1, H2), lambda i: (0, 0)),         # w2
            pl.BlockSpec((1, H2), lambda i: (0, 0)),          # b2
            pl.BlockSpec((H2, OUT_PAD), lambda i: (0, 0)),    # w3 (padded)
            pl.BlockSpec((1, OUT_PAD), lambda i: (0, 0)),     # b3 (padded)
        ],
        out_specs=pl.BlockSpec((TB, OUT_PAD), lambda i: (i, 0)),
        compiler_params=pltpu.CompilerParams(
            dimension_semantics=("parallel",),
            vmem_limit_bytes=32 * 1024 * 1024,
        ),
        cost_estimate=pl.CostEstimate(
            flops=flops, transcendentals=0, bytes_accessed=bytes_accessed),
    )(x_p, w1, b1, w2, b2, w3, b3)

    # Drop batch padding and the lane padding of the 10-wide output.
    return out[:B, :OUT_FEATURES]


def init_params(key):
    """Logical f32 params matching nn.Linear init, stored [in, out]."""
    k1, k2, k3, k4, k5, k6 = jax.random.split(key, 6)

    def uniform(k, shape, fan_in):
        bound = 1.0 / jnp.sqrt(fan_in)
        return jax.random.uniform(k, shape, jnp.float32, -bound, bound)

    w1 = uniform(k1, (IN_FEATURES, H1), IN_FEATURES)
    b1 = uniform(k2, (H1,), IN_FEATURES)
    w2 = uniform(k3, (H1, H2), H1)
    b2 = uniform(k4, (H2,), H1)
    w3 = uniform(k5, (H2, OUT_FEATURES), H2)
    b3 = uniform(k6, (OUT_FEATURES,), H2)
    return (w1, b1, w2, b2, w3, b3)


def prepare_params(params):
    """Pad/cast logical params into the kernel's layout.

    Weights -> bf16 (MXU rate, half the DMA bytes); biases stay f32.
    w1 padded (4,128)->(8,128); w3/b3 padded on the output dim 10->128.
    """
    w1, b1, w2, b2, w3, b3 = params
    w1p = jnp.zeros((K1_PAD, H1), jnp.bfloat16).at[:IN_FEATURES, :].set(
        w1.astype(jnp.bfloat16))
    b1p = b1.reshape(1, H1).astype(jnp.float32)
    w2p = w2.astype(jnp.bfloat16)
    b2p = b2.reshape(1, H2).astype(jnp.float32)
    w3p = jnp.zeros((H2, OUT_PAD), jnp.bfloat16).at[:, :OUT_FEATURES].set(
        w3.astype(jnp.bfloat16))
    b3p = jnp.zeros((1, OUT_PAD), jnp.float32).at[:, :OUT_FEATURES].set(
        b3.reshape(1, OUT_FEATURES))
    return (w1p, b1p, w2p, b2p, w3p, b3p)


def reference_forward(x, params):
    """Pure-JAX reference mirroring the kernel's bf16-operand / f32-acc math."""
    w1, b1, w2, b2, w3, b3 = params

    def mm(a, w):
        return jnp.dot(a.astype(jnp.bfloat16), w.astype(jnp.bfloat16),
                       preferred_element_type=jnp.float32)

    h1 = jnp.maximum(mm(x, w1) + b1, 0.0)
    h2 = jnp.maximum(mm(h1, w2) + b2, 0.0)
    return mm(h2, w3) + b3


if __name__ == "__main__":
    key = jax.random.PRNGKey(0)
    kp, kx = jax.random.split(key)

    params = init_params(kp)
    prepared = prepare_params(params)

    # Small input consistent with the module: batch=8, features=4.
    x = jax.random.normal(kx, (8, IN_FEATURES), dtype=jnp.float32)

    out = multimodal_forward(x, prepared)
    out = jax.block_until_ready(out)

    ref = reference_forward(x, params)
    assert out.shape == (8, OUT_FEATURES), out.shape
    assert jnp.allclose(out, ref, atol=2e-3, rtol=2e-3), "mismatch vs reference"

    print("KERNEL_OK")
</pallas_src>

<mosaic_0001>
module attributes {stable_mosaic.version = 11 : i64} {
  func.func @mlp_kernel(%arg0: i32, %arg1: memref<8x8xf32, #tpu.memory_space<vmem>>, %arg2: memref<8x128xbf16, #tpu.memory_space<vmem>>, %arg3: memref<1x128xf32, #tpu.memory_space<vmem>>, %arg4: memref<128x256xbf16, #tpu.memory_space<vmem>>, %arg5: memref<1x256xf32, #tpu.memory_space<vmem>>, %arg6: memref<256x128xbf16, #tpu.memory_space<vmem>>, %arg7: memref<1x128xf32, #tpu.memory_space<vmem>>, %arg8: memref<8x128xf32, #tpu.memory_space<vmem>>) attributes {dimension_semantics = [#tpu.dimension_semantics<parallel>], iteration_bounds = array<i64: 1>, scalar_prefetch = 0 : i64, scratch_operands = 0 : i64, tpu.core_type = #tpu.core_type<tc>, window_params = [{transform_indices = @transform_0, window_bounds = array<i64: 8, 8>}, {pipeline_mode = #tpu.pipeline_mode<synchronous>, transform_indices = @transform_1, window_bounds = array<i64: 8, 128>}, {pipeline_mode = #tpu.pipeline_mode<synchronous>, transform_indices = @transform_2, window_bounds = array<i64: 1, 128>}, {pipeline_mode = #tpu.pipeline_mode<synchronous>, transform_indices = @transform_3, window_bounds = array<i64: 128, 256>}, {pipeline_mode = #tpu.pipeline_mode<synchronous>, transform_indices = @transform_4, window_bounds = array<i64: 1, 256>}, {pipeline_mode = #tpu.pipeline_mode<synchronous>, transform_indices = @transform_5, window_bounds = array<i64: 256, 128>}, {pipeline_mode = #tpu.pipeline_mode<synchronous>, transform_indices = @transform_6, window_bounds = array<i64: 1, 128>}, {transform_indices = @transform_7, window_bounds = array<i64: 8, 128>}]} {
    %c0 = arith.constant 0 : index
    %c0_0 = arith.constant 0 : index
    %0 = vector.load %arg1[%c0, %c0_0] : memref<8x8xf32, #tpu.memory_space<vmem>>, vector<8x8xf32>
    %1 = arith.truncf %0 : vector<8x8xf32> to vector<8x8xbf16>
    %c0_1 = arith.constant 0 : index
    %c0_2 = arith.constant 0 : index
    %2 = vector.load %arg2[%c0_1, %c0_2] : memref<8x128xbf16, #tpu.memory_space<vmem>>, vector<8x128xbf16>
    %cst = arith.constant dense<0.000000e+00> : vector<8x128xf32>
    %3 = tpu.matmul %1, %2, %cst {dimension_numbers = #tpu.dot_dimension_numbers<[1], [0], [0], [1], [0, 0, 1, 1], [], []>} : vector<8x8xbf16>, vector<8x128xbf16>, vector<8x128xf32> -> vector<8x128xf32>
    %c0_3 = arith.constant 0 : index
    %c0_4 = arith.constant 0 : index
    %4 = vector.load %arg3[%c0_3, %c0_4] : memref<1x128xf32, #tpu.memory_space<vmem>>, vector<1x128xf32>
    %5 = vector.broadcast %4 : vector<1x128xf32> to vector<8x128xf32>
    %6 = arith.addf %3, %5 : vector<8x128xf32>
    %cst_5 = arith.constant 0.000000e+00 : f32
    %7 = vector.broadcast %cst_5 : f32 to vector<8x128xf32>
    %8 = arith.maximumf %6, %7 : vector<8x128xf32>
    %9 = arith.truncf %8 : vector<8x128xf32> to vector<8x128xbf16>
    %c0_6 = arith.constant 0 : index
    %c0_7 = arith.constant 0 : index
    %10 = vector.load %arg4[%c0_6, %c0_7] : memref<128x256xbf16, #tpu.memory_space<vmem>>, vector<128x256xbf16>
    %cst_8 = arith.constant dense<0.000000e+00> : vector<8x256xf32>
    %11 = tpu.matmul %9, %10, %cst_8 {dimension_numbers = #tpu.dot_dimension_numbers<[1], [0], [0], [1], [0, 0, 1, 1], [], []>} : vector<8x128xbf16>, vector<128x256xbf16>, vector<8x256xf32> -> vector<8x256xf32>
    %c0_9 = arith.constant 0 : index
    %c0_10 = arith.constant 0 : index
    %12 = vector.load %arg5[%c0_9, %c0_10] : memref<1x256xf32, #tpu.memory_space<vmem>>, vector<1x256xf32>
    %13 = vector.broadcast %12 : vector<1x256xf32> to vector<8x256xf32>
    %14 = arith.addf %11, %13 : vector<8x256xf32>
    %cst_11 = arith.constant 0.000000e+00 : f32
    %15 = vector.broadcast %cst_11 : f32 to vector<8x256xf32>
    %16 = arith.maximumf %14, %15 : vector<8x256xf32>
    %17 = arith.truncf %16 : vector<8x256xf32> to vector<8x256xbf16>
    %c0_12 = arith.constant 0 : index
    %c0_13 = arith.constant 0 : index
    %18 = vector.load %arg6[%c0_12, %c0_13] : memref<256x128xbf16, #tpu.memory_space<vmem>>, vector<256x128xbf16>
    %cst_14 = arith.constant dense<0.000000e+00> : vector<8x128xf32>
    %19 = tpu.matmul %17, %18, %cst_14 {dimension_numbers = #tpu.dot_dimension_numbers<[1], [0], [0], [1], [0, 0, 1, 1], [], []>} : vector<8x256xbf16>, vector<256x128xbf16>, vector<8x128xf32> -> vector<8x128xf32>
    %c0_15 = arith.constant 0 : index
    %c0_16 = arith.constant 0 : index
    %20 = vector.load %arg7[%c0_15, %c0_16] : memref<1x128xf32, #tpu.memory_space<vmem>>, vector<1x128xf32>
    %21 = vector.broadcast %20 : vector<1x128xf32> to vector<8x128xf32>
    %22 = arith.addf %19, %21 : vector<8x128xf32>
    %c0_17 = arith.constant 0 : index
    %c0_18 = arith.constant 0 : index
    %23 = vector.load %arg8[%c0_17, %c0_18] : memref<8x128xf32, #tpu.memory_space<vmem>>, vector<8x128xf32>
    tpu.vector_store %arg8[%c0_17, %c0_18], %22 {strides = array<i32>} : memref<8x128xf32, #tpu.memory_space<vmem>>, vector<8x128xf32>,
    return
  }
  func.func @transform_0(%arg0: i32) -> (i32, i32) {
    %c0_i32 = arith.constant 0 : i32
    %c0_i32_0 = arith.constant 0 : i32
    return %arg0, %c0_i32 : i32, i32
  }
  func.func @transform_1(%arg0: i32) -> (i32, i32) {
    %c0_i32 = arith.constant 0 : i32
    %c0_i32_0 = arith.constant 0 : i32
    %c0_i32_1 = arith.constant 0 : i32
    return %c0_i32, %c0_i32_0 : i32, i32
  }
  func.func @transform_2(%arg0: i32) -> (i32, i32) {
    %c0_i32 = arith.constant 0 : i32
    %c0_i32_0 = arith.constant 0 : i32
    %c0_i32_1 = arith.constant 0 : i32
    return %c0_i32, %c0_i32_0 : i32, i32
  }
  func.func @transform_3(%arg0: i32) -> (i32, i32) {
    %c0_i32 = arith.constant 0 : i32
    %c0_i32_0 = arith.constant 0 : i32
    %c0_i32_1 = arith.constant 0 : i32
    return %c0_i32, %c0_i32_0 : i32, i32
  }
  func.func @transform_4(%arg0: i32) -> (i32, i32) {
    %c0_i32 = arith.constant 0 : i32
    %c0_i32_0 = arith.constant 0 : i32
    %c0_i32_1 = arith.constant 0 : i32
    return %c0_i32, %c0_i32_0 : i32, i32
  }
  func.func @transform_5(%arg0: i32) -> (i32, i32) {
    %c0_i32 = arith.constant 0 : i32
    %c0_i32_0 = arith.constant 0 : i32
    %c0_i32_1 = arith.constant 0 : i32
    return %c0_i32, %c0_i32_0 : i32, i32
  }
  func.func @transform_6(%arg0: i32) -> (i32, i32) {
    %c0_i32 = arith.constant 0 : i32
    %c0_i32_0 = arith.constant 0 : i32
    %c0_i32_1 = arith.constant 0 : i32
    return %c0_i32, %c0_i32_0 : i32, i32
  }
  func.func @transform_7(%arg0: i32) -> (i32, i32) {
    %c0_i32 = arith.constant 0 : i32
    %c0_i32_0 = arith.constant 0 : i32
    return %arg0, %c0_i32 : i32, i32
  }
}

</mosaic_0001>

<llo_original>
// kernel: multimodal_forward.1
$region0: #{multimodal_forward.1}
  #allocation0 [shape = 'u32[]', space=smem, size = 0x4, offset = 0x4, fixed_abs, tag = 'smem constant byte address 0x4 - core index']
  #allocation1 [shape = 'u32[72,128]{1,0:T(1,128)}', space=vmem, size = 0x9000, scoped, tag = 'internal scratch']
  %s0 = inlined_call_operand.vmem [shape: f32[8,8], index: 0, kind: input, shape index: {}]
  %s1 = inlined_call_operand.vmem [shape: bf16[8,128], index: 1, kind: input, shape index: {}]
  %s2 = inlined_call_operand.vmem [shape: f32[1,128], index: 2, kind: input, shape index: {}]
  %s3 = inlined_call_operand.hbm [shape: bf16[128,256], index: 3, kind: input, shape index: {}]
  %s4 = inlined_call_operand.vmem [shape: f32[1,256], index: 4, kind: input, shape index: {}]
  %s5 = inlined_call_operand.hbm [shape: bf16[256,128], index: 5, kind: input, shape index: {}]
  %s6 = inlined_call_operand.vmem [shape: f32[1,128], index: 6, kind: input, shape index: {}]
  %s7 = inlined_call_operand.hbm [shape: f32[8,128], index: 7, kind: output, shape index: {}]
  %s8 = sld [smem:[#allocation0]]
  $region46: #{multimodal_forward.1} parent=0
    _
  %s10 = ssub.s32 1, %s8
  %s11 = scalar_select 0, %s10, %s8
  $region1: #{multimodal_forward.1} parent=0
    #allocation2 [shape = 'u8[65536]{0}', space=vmem, size = 0x10000, scoped, tag = 'input window, operand 3, single buffered']
    #allocation3 [shape = 's32[1]{0}', space=sflag, size = 0x4, scoped, tag = 'scoped memory for multimodal_forward.1']
    #allocation4 [shape = 's32[1]{0}', space=sflag, size = 0x4, scoped, tag = 'scoped memory for multimodal_forward.1']
    #allocation5 [shape = 'u8[65536]{0}', space=vmem, size = 0x10000, scoped, tag = 'input window, operand 5, single buffered']
    #allocation6 [shape = 's32[1]{0}', space=sflag, size = 0x4, scoped, tag = 'scoped memory for multimodal_forward.1']
    #allocation7 [shape = 'u8[4096]{0}', space=vmem, size = 0x1000, scoped, tag = 'output window, operand 0, single buffered']
    %12 = vsyncpa [#allocation3], 0
    %13 = vsyncpa [#allocation6], 0
    %14 = vsyncpa [#allocation4], 0
    // Predicated region
    $region2: #{multimodal_forward.1} parent=1 // pred_check
      _
    $region3: #{multimodal_forward.1} parent=1 // pred_check_branch
      %16 = sbr.rel (0) target = $region5
    $region4: #{multimodal_forward.1} parent=1 // pred_region
      _
    $region5: #{multimodal_forward.1} parent=1 // pred_fallthru
      _
    // Predicated region
    $region6: #{multimodal_forward.1} parent=1 // pred_check
      _
    $region7: #{multimodal_forward.1} parent=1 // pred_check_branch
      %18 = sbr.rel (0) target = $region9
    $region8: #{multimodal_forward.1} parent=1 // pred_region
      _
    $region9: #{multimodal_forward.1} parent=1 // pred_fallthru
      _
    // Predicated region
    $region10: #{multimodal_forward.1} parent=1 // pred_check
      _
    $region11: #{multimodal_forward.1} parent=1 // pred_check_branch
      %20 = sbr.rel (0) target = $region13
    $region12: #{multimodal_forward.1} parent=1 // pred_region
      _
    $region13: #{multimodal_forward.1} parent=1 // pred_fallthru
      _
    // Predicated region
    $region14: #{multimodal_forward.1} parent=1 // pred_check
      _
    $region15: #{multimodal_forward.1} parent=1 // pred_check_branch
      %22 = sbr.rel (0) target = $region17
    $region16: #{multimodal_forward.1} parent=1 // pred_region
      %24 = vsyncadd [#allocation3], 0
      %s25 = sshll.u32 %s3, 4
      %s26 = int_to_ptr.hbm [resolvable:$true] %s25
      %s27 = sshll.u32 [#allocation2], 4
      %s28 = int_to_ptr.vmem [resolvable:$true] %s27
      %33 = dma.hbm_to_vmem [thread:$0]  %s26, 2048, %s28, [#allocation3], 128, 128, 8
    $region17: #{multimodal_forward.1} parent=1 // pred_fallthru
      _
    // Predicated region
    $region18: #{multimodal_forward.1} parent=1 // pred_check
      _
    $region19: #{multimodal_forward.1} parent=1 // pred_check_branch
      %35 = sbr.rel (0) target = $region21
    $region20: #{multimodal_forward.1} parent=1 // pred_region
      _
    $region21: #{multimodal_forward.1} parent=1 // pred_fallthru
      _
    // Predicated region
    $region22: #{multimodal_forward.1} parent=1 // pred_check
      _
    $region23: #{multimodal_forward.1} parent=1 // pred_check_branch
      %37 = sbr.rel (0) target = $region25
    $region24: #{multimodal_forward.1} parent=1 // pred_region
      %39 = vsyncadd [#allocation6], 0
      %s40 = sshll.u32 %s5, 4
      %s41 = int_to_ptr.hbm [resolvable:$true] %s40
      %s42 = sshll.u32 [#allocation5], 4
      %s43 = int_to_ptr.vmem [resolvable:$true] %s42
      %48 = dma.hbm_to_vmem [thread:$0]  %s41, 2048, %s43, [#allocation6], 64, 64, 4
    $region25: #{multimodal_forward.1} parent=1 // pred_fallthru
      _
    // Predicated region
    $region26: #{multimodal_forward.1} parent=1 // pred_check
      _
    $region27: #{multimodal_forward.1} parent=1 // pred_check_branch
      %50 = sbr.rel (0) target = $region29
    $region28: #{multimodal_forward.1} parent=1 // pred_region
      _
    $region29: #{multimodal_forward.1} parent=1 // pred_fallthru
      _
    // Predicated region
    $region30: #{multimodal_forward.1} parent=1 // pred_check
      _
    $region31: #{multimodal_forward.1} parent=1 // pred_check_branch
      %52 = sbr.rel (0) target = $region33
    $region32: #{multimodal_forward.1} parent=1 // pred_region
      %54 = dma.done [#allocation3], 2048
    $region33: #{multimodal_forward.1} parent=1 // pred_fallthru
      _
    // Predicated region
    $region34: #{multimodal_forward.1} parent=1 // pred_check
      _
    $region35: #{multimodal_forward.1} parent=1 // pred_check_branch
      %56 = sbr.rel (0) target = $region37
    $region36: #{multimodal_forward.1} parent=1 // pred_region
      %58 = dma.done [#allocation6], 2048
    $region37: #{multimodal_forward.1} parent=1 // pred_fallthru
      _
    %v60 = vld [vmem:[%s0] sm:$0xff]
    %v61 = vpack.c.bf16 %v60, %v60
    %v62 = vld [vmem:[%s1] sm:$0xf]
    %v63 = vld [vmem:[%s2] sm:$0x1]
    %v65 = vperm.slane %v63, 0
    %vm67 = vcmask 64512
    %v69 = vsel %vm67, %v61, 0
    %vm71 = vcmask 1043456
    %v73 = vsel %vm71, %v62, 0
    %75 = vmatpush.bf16.msra.mxu0 0
    %76 = vmatpush.bf16.msra.mxu0 0
    %77 = vmatpush.bf16.msra.mxu0 0
    %78 = vmatpush.bf16.msra.mxu0 0
    %79 = vmatpush.bf16.msra.mxu0 0
    %80 = vmatpush.bf16.msra.mxu0 0
    %81 = vmatpush.bf16.msra.mxu0 0
    %82 = vmatpush.bf16.msra.mxu0 %v73
    %83 = vmatmul.bf16.gmra.mxu0 %v69
    %v84 = vpop.f32.mrf.mxu0
    %v85 = vadd.f32 %v65, %v84
    %v86 = vpop.f32.mrf.mxu0
    %87 = vdwg.mxu0
    %v88 = vmax.f32 %v85, 0.0
    %v89 = vpack.c.bf16 %v88, %v88
    %v90 = vld [vmem:[#allocation2] sm:$0xff]
    %v91 = vld [vmem:[#allocation2 + $0x8] sm:$0xff]
    %v92 = vld [vmem:[#allocation2 + $0x10] sm:$0xff]
    %v93 = vld [vmem:[#allocation2 + $0x18] sm:$0xff]
    %v94 = vld [vmem:[#allocation2 + $0x20] sm:$0xff]
    %v95 = vld [vmem:[#allocation2 + $0x28] sm:$0xff]
    %v96 = vld [vmem:[#allocation2 + $0x30] sm:$0xff]
    %v97 = vld [vmem:[#allocation2 + $0x38] sm:$0xff]
    %v98 = vld [vmem:[#allocation2 + $0x40] sm:$0xff]
    %v99 = vld [vmem:[#allocation2 + $0x48] sm:$0xff]
    %v100 = vld [vmem:[#allocation2 + $0x50] sm:$0xff]
    %v101 = vld [vmem:[#allocation2 + $0x58] sm:$0xff]
    %v102 = vld [vmem:[#allocation2 + $0x60] sm:$0xff]
    %v103 = vld [vmem:[#allocation2 + $0x68] sm:$0xff]
    %v104 = vld [vmem:[#allocation2 + $0x70] sm:$0xff]
    %v105 = vld [vmem:[#allocation2 + $0x78] sm:$0xff]
    %v106 = vld [vmem:[%s4] sm:$0x3]
    %v108 = vperm.slane %v106, 0
    %v109 = vperm.slane %v106, 1
    %v128 = vunpack.c.l.b16 %v90
    %v129 = vunpack.c.h.b16 %v90
    %v130 = vunpack.c.l.b16 %v91
    %v131 = vunpack.c.h.b16 %v91
    %v132 = vunpack.c.l.b16 %v92
    %v133 = vunpack.c.h.b16 %v92
    %v134 = vunpack.c.l.b16 %v93
    %v135 = vunpack.c.h.b16 %v93
    %v136 = vunpack.c.l.b16 %v94
    %v137 = vunpack.c.h.b16 %v94
    %v138 = vunpack.c.l.b16 %v95
    %v139 = vunpack.c.h.b16 %v95
    %v140 = vunpack.c.l.b16 %v96
    %v141 = vunpack.c.h.b16 %v96
    %v142 = vunpack.c.l.b16 %v97
    %v143 = vunpack.c.h.b16 %v97
    %v144 = vunpack.c.l.b16 %v98
    %v145 = vunpack.c.h.b16 %v98
    %v146 = vunpack.c.l.b16 %v99
    %v147 = vunpack.c.h.b16 %v99
    %v148 = vunpack.c.l.b16 %v100
    %v149 = vunpack.c.h.b16 %v100
    %v150 = vunpack.c.l.b16 %v101
    %v151 = vunpack.c.h.b16 %v101
    %v152 = vunpack.c.l.b16 %v102
    %v153 = vunpack.c.h.b16 %v102
    %v154 = vunpack.c.l.b16 %v103
    %v155 = vunpack.c.h.b16 %v103
    %v156 = vunpack.c.l.b16 %v104
    %v157 = vunpack.c.h.b16 %v104
    %v158 = vunpack.c.l.b16 %v105
    %v159 = vunpack.c.h.b16 %v105
    %v160 = vpack.c.b16 %v130, %v128
    %v161 = vpack.c.b16 %v131, %v129
    %v162 = vpack.c.b16 %v134, %v132
    %v163 = vpack.c.b16 %v135, %v133
    %v164 = vpack.c.b16 %v138, %v136
    %v165 = vpack.c.b16 %v139, %v137
    %v166 = vpack.c.b16 %v142, %v140
    %v167 = vpack.c.b16 %v143, %v141
    %v168 = vpack.c.b16 %v146, %v144
    %v169 = vpack.c.b16 %v147, %v145
    %v170 = vpack.c.b16 %v150, %v148
    %v171 = vpack.c.b16 %v151, %v149
    %v172 = vpack.c.b16 %v154, %v152
    %v173 = vpack.c.b16 %v155, %v153
    %v174 = vpack.c.b16 %v158, %v156
    %v175 = vpack.c.b16 %v159, %v157
    %192 = vmatpush.bf16.msra.mxu0 %v174
    %193 = vmatpush.bf16.msra.mxu0 %v172
    %194 = vmatpush.bf16.msra.mxu0 %v170
    %195 = vmatpush.bf16.msra.mxu0 %v168
    %196 = vmatpush.bf16.msra.mxu0 %v166
    %197 = vmatpush.bf16.msra.mxu0 %v164
    %198 = vmatpush.bf16.msra.mxu0 %v162
    %199 = vmatpush.bf16.msra.mxu0 %v160
    %200 = vmatmul.bf16.gmra.mxu0 %v89
    %v201 = vpop.f32.mrf.mxu0
    %v202 = vadd.f32 %v108, %v201
    %v203 = vpop.f32.mrf.mxu0
    %204 = vdwg.mxu0
    %205 = vmatpush.bf16.msra.mxu0 %v175
    %206 = vmatpush.bf16.msra.mxu0 %v173
    %207 = vmatpush.bf16.msra.mxu0 %v171
    %208 = vmatpush.bf16.msra.mxu0 %v169
    %209 = vmatpush.bf16.msra.mxu0 %v167
    %210 = vmatpush.bf16.msra.mxu0 %v165
    %211 = vmatpush.bf16.msra.mxu0 %v163
    %212 = vmatpush.bf16.msra.mxu0 %v161
    %213 = vmatmul.bf16.gmra.mxu0 %v89
    %v214 = vpop.f32.mrf.mxu0
    %v215 = vadd.f32 %v109, %v214
    %v216 = vpop.f32.mrf.mxu0
    %217 = vdwg.mxu0
    %v218 = vmax.f32 %v202, 0.0
    %v219 = vmax.f32 %v215, 0.0
    %v220 = vpack.c.bf16 %v218, %v218
    %v221 = vpack.c.bf16 %v219, %v219
    %v222 = vld [vmem:[#allocation5] sm:$0xf]
    %v223 = vld [vmem:[#allocation5 + $0x4] sm:$0xf]
    %v224 = vld [vmem:[#allocation5 + $0x8] sm:$0xf]
    %v225 = vld [vmem:[#allocation5 + $0xc] sm:$0xf]
    %v226 = vld [vmem:[#allocation5 + $0x10] sm:$0xf]
    %v227 = vld [vmem:[#allocation5 + $0x14] sm:$0xf]
    %v228 = vld [vmem:[#allocation5 + $0x18] sm:$0xf]
    %v229 = vld [vmem:[#allocation5 + $0x1c] sm:$0xf]
    %v230 = vld [vmem:[#allocation5 + $0x20] sm:$0xf]
    %v231 = vld [vmem:[#allocation5 + $0x24] sm:$0xf]
    %v232 = vld [vmem:[#allocation5 + $0x28] sm:$0xf]
    %v233 = vld [vmem:[#allocation5 + $0x2c] sm:$0xf]
    %v234 = vld [vmem:[#allocation5 + $0x30] sm:$0xf]
    %v235 = vld [vmem:[#allocation5 + $0x34] sm:$0xf]
    %v236 = vld [vmem:[#allocation5 + $0x38] sm:$0xf]
    %v237 = vld [vmem:[#allocation5 + $0x3c] sm:$0xf]
    %v238 = vld [vmem:[#allocation5 + $0x40] sm:$0xf]
    %v239 = vld [vmem:[#allocation5 + $0x44] sm:$0xf]
    %v240 = vld [vmem:[#allocation5 + $0x48] sm:$0xf]
    %v241 = vld [vmem:[#allocation5 + $0x4c] sm:$0xf]
    %v242 = vld [vmem:[#allocation5 + $0x50] sm:$0xf]
    %v243 = vld [vmem:[#allocation5 + $0x54] sm:$0xf]
    %v244 = vld [vmem:[#allocation5 + $0x58] sm:$0xf]
    %v245 = vld [vmem:[#allocation5 + $0x5c] sm:$0xf]
    %v246 = vld [vmem:[#allocation5 + $0x60] sm:$0xf]
    %v247 = vld [vmem:[#allocation5 + $0x64] sm:$0xf]
    %v248 = vld [vmem:[#allocation5 + $0x68] sm:$0xf]
    %v249 = vld [vmem:[#allocation5 + $0x6c] sm:$0xf]
    %v250 = vld [vmem:[#allocation5 + $0x70] sm:$0xf]
    %v251 = vld [vmem:[#allocation5 + $0x74] sm:$0xf]
    %v252 = vld [vmem:[#allocation5 + $0x78] sm:$0xf]
    %v253 = vld [vmem:[#allocation5 + $0x7c] sm:$0xf]
    %v254 = vld [vmem:[%s6] sm:$0x1]
    %v256 = vperm.slane %v254, 0
    %v290 = vunpack.c.l.b16 %v222
    %v291 = vunpack.c.l.b16 %v223
    %v292 = vunpack.c.l.b16 %v224
    %v293 = vunpack.c.l.b16 %v225
    %v294 = vunpack.c.l.b16 %v226
    %v295 = vunpack.c.l.b16 %v227
    %v296 = vunpack.c.l.b16 %v228
    %v297 = vunpack.c.l.b16 %v229
    %v298 = vunpack.c.l.b16 %v230
    %v299 = vunpack.c.l.b16 %v231
    %v300 = vunpack.c.l.b16 %v232
    %v301 = vunpack.c.l.b16 %v233
    %v302 = vunpack.c.l.b16 %v234
    %v303 = vunpack.c.l.b16 %v235
    %v304 = vunpack.c.l.b16 %v236
    %v305 = vunpack.c.l.b16 %v237
    %v306 = vunpack.c.l.b16 %v238
    %v307 = vunpack.c.l.b16 %v239
    %v308 = vunpack.c.l.b16 %v240
    %v309 = vunpack.c.l.b16 %v241
    %v310 = vunpack.c.l.b16 %v242
    %v311 = vunpack.c.l.b16 %v243
    %v312 = vunpack.c.l.b16 %v244
    %v313 = vunpack.c.l.b16 %v245
    %v314 = vunpack.c.l.b16 %v246
    %v315 = vunpack.c.l.b16 %v247
    %v316 = vunpack.c.l.b16 %v248
    %v317 = vunpack.c.l.b16 %v249
    %v318 = vunpack.c.l.b16 %v250
    %v319 = vunpack.c.l.b16 %v251
    %v320 = vunpack.c.l.b16 %v252
    %v321 = vunpack.c.l.b16 %v253
    %v322 = vpack.c.b16 %v291, %v290
    %v323 = vpack.c.b16 %v293, %v292
    %v324 = vpack.c.b16 %v295, %v294
    %v325 = vpack.c.b16 %v297, %v296
    %v326 = vpack.c.b16 %v299, %v298
    %v327 = vpack.c.b16 %v301, %v300
    %v328 = vpack.c.b16 %v303, %v302
    %v329 = vpack.c.b16 %v305, %v304
    %v330 = vpack.c.b16 %v307, %v306
    %v331 = vpack.c.b16 %v309, %v308
    %v332 = vpack.c.b16 %v311, %v310
    %v333 = vpack.c.b16 %v313, %v312
    %v334 = vpack.c.b16 %v315, %v314
    %v335 = vpack.c.b16 %v317, %v316
    %v336 = vpack.c.b16 %v319, %v318
    %v337 = vpack.c.b16 %v321, %v320
    %354 = vmatpush.bf16.msra.mxu0 %v329
    %355 = vmatpush.bf16.msra.mxu0 %v328
    %356 = vmatpush.bf16.msra.mxu0 %v327
    %357 = vmatpush.bf16.msra.mxu0 %v326
    %358 = vmatpush.bf16.msra.mxu0 %v325
    %359 = vmatpush.bf16.msra.mxu0 %v324
    %360 = vmatpush.bf16.msra.mxu0 %v323
    %361 = vmatpush.bf16.msra.mxu0 %v322
    %362 = vmatmul.bf16.gmra.mxu0 %v220
    %v363 = vpop.f32.mrf.mxu0
    %v364 = vadd.f32 %v256, %v363
    %v365 = vpop.f32.mrf.mxu0
    %366 = vdwg.mxu0
    %367 = vmatpush.bf16.msra.mxu0 %v337
    %368 = vmatpush.bf16.msra.mxu0 %v336
    %369 = vmatpush.bf16.msra.mxu0 %v335
    %370 = vmatpush.bf16.msra.mxu0 %v334
    %371 = vmatpush.bf16.msra.mxu0 %v333
    %372 = vmatpush.bf16.msra.mxu0 %v332
    %373 = vmatpush.bf16.msra.mxu0 %v331
    %374 = vmatpush.bf16.msra.mxu0 %v330
    %375 = vmatmul.bf16.gmra.mxu0 %v221
    %v376 = vpop.f32.mrf.mxu0
    %v377 = vadd.f32 %v364, %v376
    %v378 = vpop.f32.mrf.mxu0
    %379 = vdwg.mxu0
    %380 = vst [vmem:[#allocation7] sm:$0xff] %v377
    // Predicated region
    $region38: #{multimodal_forward.1} parent=1 // pred_check
      _
    $region39: #{multimodal_forward.1} parent=1 // pred_check_branch
      %382 = sbr.rel (0) target = $region41
    $region40: #{multimodal_forward.1} parent=1 // pred_region
      %384 = vsyncadd [#allocation4], 0
      %s386 = sshll.u32 [#allocation7], 4
      %s387 = int_to_ptr.vmem [resolvable:$true] %s386
      %s388 = sshll.u32 %s7, 4
      %s389 = int_to_ptr.hbm [resolvable:$true] %s388
      %391 = dma.vmem_to_hbm [thread:$0]  %s387, 128, %s389, [#allocation4]
    $region41: #{multimodal_forward.1} parent=1 // pred_fallthru
      _
    // Predicated region
    $region42: #{multimodal_forward.1} parent=1 // pred_check
      _
    $region43: #{multimodal_forward.1} parent=1 // pred_check_branch
      %393 = sbr.rel (0) target = $region45
    $region44: #{multimodal_forward.1} parent=1 // pred_region
      %395 = dma.done [#allocation4], 128
    $region45: #{multimodal_forward.1} parent=1 // pred_fallthru
      _
    %396 = vsyncpa [#allocation3], 1
    %397 = vsyncpa [#allocation6], 1
    %398 = vsyncpa [#allocation4], 1

</llo_original>
